<compile_context>
chip_gen: v7x
topology: tpu7x:2x2x1
jax: 0.10.0
libtpu: 0.0.40
codegen_flags: <defaults>
</compile_context>

<pallas_src>
import math
from functools import partial

import jax
import jax.numpy as jnp
from jax.experimental import pallas as pl
from jax.experimental.pallas import tpu as pltpu

_GELU_C = 0.7978845608028654  # sqrt(2/pi)
_NEG_BIG = -1e30              # finite causal-mask bias (avoids exp(-inf) NaNs)


# ----------------------------- in-kernel helpers ----------------------------

def _layernorm(x, g, b, eps=1e-5):
    mu = jnp.mean(x, axis=-1, keepdims=True)
    var = jnp.mean(jnp.square(x - mu), axis=-1, keepdims=True)
    return (x - mu) * jax.lax.rsqrt(var + eps) * g + b


def _gelu_tanh(x):
    return 0.5 * x * (1.0 + jnp.tanh(_GELU_C * (x + 0.044715 * x * x * x)))


# ------------------------------- Pallas kernels -----------------------------

def _add_pos_kernel(tok_ref, pos_ref, o_ref):
    # (1, T, D) + (T, D) broadcast add, one batch element per grid step.
    o_ref[...] = tok_ref[...] + pos_ref[...]


def _block_kernel(x_ref, g1_ref, b1_ref, wqkv_ref, bqkv_ref, wproj_ref, bproj_ref,
                  g2_ref, b2_ref, wfc_ref, bfc_ref, wproj2_ref, bproj2_ref,
                  o_ref, *, n_head, scale):
    # One grid step = one batch element; the whole transformer block is fused:
    #   ln1 -> QKV matmul -> per-head causal softmax attention -> c_proj
    #   -> residual -> ln2 -> c_fc -> GELU -> c_proj -> residual.
    x = x_ref[...].astype(jnp.float32)                      # (T, D)
    T, D = x.shape
    hd = D // n_head

    # ---------------- attention sub-block ----------------
    h = _layernorm(x, g1_ref[...], b1_ref[...])             # f32
    qkv = jnp.dot(h.astype(jnp.bfloat16), wqkv_ref[...],    # bf16 MXU, f32 acc
                  preferred_element_type=jnp.float32) + bqkv_ref[...]   # (T, 3D)

    # Causal additive bias: computed once, reused by every head.
    row = jax.lax.broadcasted_iota(jnp.int32, (T, T), 0)
    col = jax.lax.broadcasted_iota(jnp.int32, (T, T), 1)
    causal_bias = jnp.where(col <= row,
                            jnp.float32(0.0), jnp.float32(_NEG_BIG))

    heads = []
    for hh in range(n_head):
        lo = hh * hd
        qh = qkv[:, lo:lo + hd].astype(jnp.bfloat16)
        kh = qkv[:, D + lo:D + lo + hd].astype(jnp.bfloat16)
        vh = qkv[:, 2 * D + lo:2 * D + lo + hd].astype(jnp.bfloat16)
        # q @ k^T via dot_general (contract last dims, no explicit transpose)
        s = jax.lax.dot_general(qh, kh, (((1,), (1,)), ((), ())),
                                preferred_element_type=jnp.float32)
        s = s * scale + causal_bias
        m = jnp.max(s, axis=-1, keepdims=True)
        p = jnp.exp(s - m)
        inv = pl.reciprocal(jnp.sum(p, axis=-1, keepdims=True), approx=True)
        p = (p * inv).astype(jnp.bfloat16)
        heads.append(jnp.dot(p, vh, preferred_element_type=jnp.float32))
    y = jnp.concatenate(heads, axis=-1)                     # (T, D) f32

    attn = jnp.dot(y.astype(jnp.bfloat16), wproj_ref[...],
                   preferred_element_type=jnp.float32) + bproj_ref[...]
    xa = x + attn                                           # residual (f32)

    # ------------------ MLP sub-block --------------------
    h2 = _layernorm(xa, g2_ref[...], b2_ref[...])
    u = jnp.dot(h2.astype(jnp.bfloat16), wfc_ref[...],
                preferred_element_type=jnp.float32) + bfc_ref[...]
    u = _gelu_tanh(u)                                       # f32 epilogue
    y2 = jnp.dot(u.astype(jnp.bfloat16), wproj2_ref[...],
                 preferred_element_type=jnp.float32) + bproj2_ref[...]
    o_ref[...] = (xa + y2).astype(o_ref.dtype)              # fused residual add


def _final_kernel(x_ref, g_ref, b_ref, w_ref, o_ref, h_ref):
    # ln_f + weight-tied lm_head matmul (no bias).
    # LN is computed once per row tile (vocab axis is the inner "arbitrary"
    # grid dim) and cached in VMEM scratch to avoid redundant work when the
    # vocab dimension is tiled.
    @pl.when(pl.program_id(1) == 0)
    def _():
        x = x_ref[...].astype(jnp.float32)
        h_ref[...] = _layernorm(x, g_ref[...], b_ref[...]).astype(jnp.bfloat16)
    o_ref[...] = jnp.dot(h_ref[...], w_ref[...],
                         preferred_element_type=jnp.float32).astype(o_ref.dtype)


# ------------------------------ kernel wrappers -----------------------------

def _row_tile(n, candidates=(512, 256, 128, 64, 32, 16, 8)):
    for t in candidates:
        if n % t == 0:
            return t
    return n


def _vocab_tile(n, candidates=(512, 384, 256, 128)):
    # lane-dense (multiple of 128) tiles when vocab allows; full extent otherwise
    for t in candidates:
        if n % t == 0:
            return t
    return n


def add_pos(tok_emb, pos_emb):
    B, T, D = tok_emb.shape
    return pl.pallas_call(
        _add_pos_kernel,
        out_shape=jax.ShapeDtypeStruct((B, T, D), tok_emb.dtype),
        grid=(B,),
        in_specs=[pl.BlockSpec((1, T, D), lambda i: (i, 0, 0)),
                  pl.BlockSpec((T, D), lambda i: (0, 0))],
        out_specs=pl.BlockSpec((1, T, D), lambda i: (i, 0, 0)),
        compiler_params=pltpu.CompilerParams(
            dimension_semantics=("parallel",)),
    )(tok_emb, pos_emb)


def transformer_block(x2d, blk, n_head, seq_len):
    # Fully fused attention + MLP sub-blocks; grid over batch ("parallel").
    M, D = x2d.shape
    B = M // seq_len
    DF = blk["c_fc_w"].shape[1]
    scale = 1.0 / math.sqrt(D // n_head)
    const = lambda i: (0, 0)
    return pl.pallas_call(
        partial(_block_kernel, n_head=n_head, scale=scale),
        out_shape=jax.ShapeDtypeStruct((M, D), x2d.dtype),
        grid=(B,),
        in_specs=[
            pl.BlockSpec((seq_len, D), lambda i: (i, 0)),   # x rows of batch i
            pl.BlockSpec((1, D), const),                    # ln1 gamma
            pl.BlockSpec((1, D), const),                    # ln1 beta
            pl.BlockSpec((D, 3 * D), const),                # c_attn W (bf16)
            pl.BlockSpec((1, 3 * D), const),                # c_attn b
            pl.BlockSpec((D, D), const),                    # c_proj W (bf16)
            pl.BlockSpec((1, D), const),                    # c_proj b
            pl.BlockSpec((1, D), const),                    # ln2 gamma
            pl.BlockSpec((1, D), const),                    # ln2 beta
            pl.BlockSpec((D, DF), const),                   # c_fc W (bf16)
            pl.BlockSpec((1, DF), const),                   # c_fc b
            pl.BlockSpec((DF, D), const),                   # mlp c_proj W (bf16)
            pl.BlockSpec((1, D), const),                    # mlp c_proj b
        ],
        out_specs=pl.BlockSpec((seq_len, D), lambda i: (i, 0)),
        compiler_params=pltpu.CompilerParams(
            dimension_semantics=("parallel",)),
    )(x2d, blk["ln1_g"], blk["ln1_b"], blk["c_attn_w"], blk["c_attn_b"],
      blk["c_proj_w"], blk["c_proj_b"],
      blk["ln2_g"], blk["ln2_b"], blk["c_fc_w"], blk["c_fc_b"],
      blk["c_proj2_w"], blk["c_proj2_b"])


def final_ln_lm_head(x2d, ln_g, ln_b, w_lm, tile_m):
    M, D = x2d.shape
    V = w_lm.shape[1]
    tile_v = _vocab_tile(V)
    return pl.pallas_call(
        _final_kernel,
        out_shape=jax.ShapeDtypeStruct((M, V), jnp.float32),
        grid=(M // tile_m, V // tile_v),
        in_specs=[
            pl.BlockSpec((tile_m, D), lambda i, j: (i, 0)),
            pl.BlockSpec((1, D), lambda i, j: (0, 0)),
            pl.BlockSpec((1, D), lambda i, j: (0, 0)),
            pl.BlockSpec((D, tile_v), lambda i, j: (0, j)),
        ],
        out_specs=pl.BlockSpec((tile_m, tile_v), lambda i, j: (i, j)),
        scratch_shapes=[pltpu.VMEM((tile_m, D), jnp.bfloat16)],
        compiler_params=pltpu.CompilerParams(
            dimension_semantics=("parallel", "arbitrary")),
    )(x2d, ln_g, ln_b, w_lm)


# ------------------------------- GPT model ----------------------------------

class GPTConfig:
    vocab_size = 64
    block_size = 16
    n_layer = 2
    n_head = 4
    n_embd = 32


def init_params(key, cfg):
    std = 0.02
    proj_std = 0.02 * (2 * cfg.n_layer) ** -0.5   # NANOGPT_SCALE_INIT on c_proj
    keys = iter(jax.random.split(key, 8 + 8 * cfg.n_layer))

    def nrm(shape, s):
        return (s * jax.random.normal(next(keys), shape)).astype(jnp.float32)

    D = cfg.n_embd
    params = dict(
        wte=nrm((cfg.vocab_size, D), std),        # tied with lm_head
        wpe=nrm((cfg.block_size, D), std),
        ln_f_g=jnp.ones((D,), jnp.float32),
        ln_f_b=jnp.zeros((D,), jnp.float32),
        blocks=[],
    )
    for _ in range(cfg.n_layer):
        params["blocks"].append(dict(
            ln1_g=jnp.ones((D,), jnp.float32), ln1_b=jnp.zeros((D,), jnp.float32),
            ln2_g=jnp.ones((D,), jnp.float32), ln2_b=jnp.zeros((D,), jnp.float32),
            c_attn_w=nrm((D, 3 * D), std), c_attn_b=jnp.zeros((3 * D,), jnp.float32),
            c_proj_w=nrm((D, D), proj_std), c_proj_b=jnp.zeros((D,), jnp.float32),
            c_fc_w=nrm((D, 4 * D), std), c_fc_b=jnp.zeros((4 * D,), jnp.float32),
            c_proj2_w=nrm((4 * D, D), proj_std), c_proj2_b=jnp.zeros((D,), jnp.float32),
        ))
    return params


def prepare_params(params):
    """One-time, out-of-hot-path prep: bf16 matmul weights, (1, N) biases /
    layernorm params, and the pre-transposed tied lm_head weight."""
    r2 = lambda a: a.reshape(1, -1)
    prepared = dict(
        wte=params["wte"],                                  # f32 for the gather
        wpe=params["wpe"],
        ln_f_g=r2(params["ln_f_g"]), ln_f_b=r2(params["ln_f_b"]),
        lm_w=params["wte"].T.astype(jnp.bfloat16),          # (D, V), materialized once
        blocks=[],
    )
    for blk in params["blocks"]:
        prepared["blocks"].append(dict(
            ln1_g=r2(blk["ln1_g"]), ln1_b=r2(blk["ln1_b"]),
            ln2_g=r2(blk["ln2_g"]), ln2_b=r2(blk["ln2_b"]),
            c_attn_w=blk["c_attn_w"].astype(jnp.bfloat16), c_attn_b=r2(blk["c_attn_b"]),
            c_proj_w=blk["c_proj_w"].astype(jnp.bfloat16), c_proj_b=r2(blk["c_proj_b"]),
            c_fc_w=blk["c_fc_w"].astype(jnp.bfloat16), c_fc_b=r2(blk["c_fc_b"]),
            c_proj2_w=blk["c_proj2_w"].astype(jnp.bfloat16), c_proj2_b=r2(blk["c_proj2_b"]),
        ))
    return prepared


def gpt_forward(prepared, idx, cfg, targets=None):
    B, T = idx.shape
    assert T <= cfg.block_size
    D = cfg.n_embd

    tok_emb = prepared["wte"][idx]            # (B, T, D) gather (plain-JAX glue)
    pos_emb = prepared["wpe"][:T]             # (T, D)
    x = add_pos(tok_emb, pos_emb)             # Pallas broadcast add
    x = x.reshape(B * T, D)                   # contiguous reshape (free)

    for blk in prepared["blocks"]:
        # fused ln1+QKV+attn+proj+residual+ln2+fc+gelu+proj+residual
        x = transformer_block(x, blk, cfg.n_head, T)

    tile_m = _row_tile(B * T)
    logits = final_ln_lm_head(x, prepared["ln_f_g"], prepared["ln_f_b"],
                              prepared["lm_w"], tile_m)
    logits = logits.reshape(B, T, cfg.vocab_size)

    loss = None
    if targets is not None:
        # cross-entropy in plain JAX (glue); hot paths already in Pallas
        lse = jax.nn.logsumexp(logits, axis=-1)
        picked = jnp.take_along_axis(logits, targets[..., None], axis=-1)[..., 0]
        loss = jnp.mean(lse - picked)
    return logits, loss


# ----------------------------------- main ------------------------------------

if __name__ == "__main__":
    cfg = GPTConfig()
    key = jax.random.PRNGKey(0)
    pkey, ikey = jax.random.split(key)
    params = init_params(pkey, cfg)
    prepared = prepare_params(params)

    B, T = 2, 8
    idx = jax.random.randint(ikey, (B, T), 0, cfg.vocab_size, dtype=jnp.int32)

    logits, loss = gpt_forward(prepared, idx, cfg, targets=None)
    jax.block_until_ready(logits)
    assert logits.shape == (B, T, cfg.vocab_size)
    assert loss is None
    print("KERNEL_OK")
</pallas_src>

<mosaic_0001>
module attributes {stable_mosaic.version = 11 : i64} {
  func.func @_add_pos_kernel(%arg0: i32, %arg1: memref<1x8x32xf32, #tpu.memory_space<vmem>>, %arg2: memref<8x32xf32, #tpu.memory_space<vmem>>, %arg3: memref<1x8x32xf32, #tpu.memory_space<vmem>>) attributes {dimension_semantics = [#tpu.dimension_semantics<parallel>], iteration_bounds = array<i64: 2>, scalar_prefetch = 0 : i64, scratch_operands = 0 : i64, tpu.core_type = #tpu.core_type<tc>, window_params = [{transform_indices = @transform_0, window_bounds = array<i64: 1, 8, 32>}, {pipeline_mode = #tpu.pipeline_mode<synchronous>, transform_indices = @transform_1, window_bounds = array<i64: 8, 32>}, {transform_indices = @transform_2, window_bounds = array<i64: 1, 8, 32>}]} {
    %c0 = arith.constant 0 : index
    %c0_0 = arith.constant 0 : index
    %c0_1 = arith.constant 0 : index
    %0 = vector.load %arg1[%c0, %c0_0, %c0_1] : memref<1x8x32xf32, #tpu.memory_space<vmem>>, vector<1x8x32xf32>
    %c0_2 = arith.constant 0 : index
    %c0_3 = arith.constant 0 : index
    %1 = vector.load %arg2[%c0_2, %c0_3] : memref<8x32xf32, #tpu.memory_space<vmem>>, vector<8x32xf32>
    %2 = vector.shape_cast %1 : vector<8x32xf32> to vector<1x8x32xf32>
    %3 = arith.addf %0, %2 : vector<1x8x32xf32>
    %c0_4 = arith.constant 0 : index
    %c0_5 = arith.constant 0 : index
    %c0_6 = arith.constant 0 : index
    %4 = vector.load %arg3[%c0_4, %c0_5, %c0_6] : memref<1x8x32xf32, #tpu.memory_space<vmem>>, vector<1x8x32xf32>
    tpu.vector_store %arg3[%c0_4, %c0_5, %c0_6], %3 {strides = array<i32>} : memref<1x8x32xf32, #tpu.memory_space<vmem>>, vector<1x8x32xf32>,
    return
  }
  func.func @transform_0(%arg0: i32) -> (i32, i32, i32) {
    %c0_i32 = arith.constant 0 : i32
    %c0_i32_0 = arith.constant 0 : i32
    %c0_i32_1 = arith.constant 0 : i32
    return %arg0, %c0_i32, %c0_i32_0 : i32, i32, i32
  }
  func.func @transform_1(%arg0: i32) -> (i32, i32) {
    %c0_i32 = arith.constant 0 : i32
    %c0_i32_0 = arith.constant 0 : i32
    %c0_i32_1 = arith.constant 0 : i32
    return %c0_i32, %c0_i32_0 : i32, i32
  }
  func.func @transform_2(%arg0: i32) -> (i32, i32, i32) {
    %c0_i32 = arith.constant 0 : i32
    %c0_i32_0 = arith.constant 0 : i32
    %c0_i32_1 = arith.constant 0 : i32
    return %arg0, %c0_i32, %c0_i32_0 : i32, i32, i32
  }
}

</mosaic_0001>

<llo_original>
// kernel: tpu_custom_call.1
$region0: #{tpu_custom_call.1}
  #allocation0 [shape = 'u32[]', space=smem, size = 0x4, offset = 0x4, fixed_abs, tag = 'smem constant byte address 0x4 - core index']
  #allocation1 [shape = 'u32[144,128]{1,0:T(1,128)}', space=vmem, size = 0x12000, scoped, tag = 'internal scratch']
  %s0 = inlined_call_operand.hbm [shape: f32[2,8,32], index: 0, kind: input, shape index: {}]
  %s1 = inlined_call_operand.hbm [shape: f32[8,32], index: 1, kind: input, shape index: {}]
  %s2 = inlined_call_operand.hbm [shape: f32[2,8,32], index: 2, kind: output, shape index: {}]
  %s3 = sld [smem:[#allocation0]]
  $region49: #{tpu_custom_call.1} parent=0
    _
  %s5 = ssub.s32 1, %s3
  %s6 = scalar_select 0, %s5, %s3
  $region1: #{tpu_custom_call.1} parent=0
    #allocation2 [shape = 'u8[8192]{0}', space=vmem, size = 0x2000, scoped, tag = 'input window, operand 0']
    #allocation3 [shape = 's32[2]{0}', space=sflag, size = 0x8, scoped, tag = 'scoped memory for tpu_custom_call.1']
    #allocation4 [shape = 's32[2]{0}', space=sflag, size = 0x8, scoped, tag = 'scoped memory for tpu_custom_call.1']
    #allocation5 [shape = 'u8[4096]{0}', space=vmem, size = 0x1000, scoped, tag = 'input window, operand 1, single buffered']
    #allocation6 [shape = 's32[1]{0}', space=sflag, size = 0x4, scoped, tag = 'scoped memory for tpu_custom_call.1']
    #allocation7 [shape = 'u8[8192]{0}', space=vmem, size = 0x2000, scoped, tag = 'output window, operand 0']
    %7 = vsyncpa [#allocation3], 0
    %s8 = scalar_lea.sflag [#allocation3], 1
    %9 = vsyncpa %s8, 0
    %10 = vsyncpa [#allocation6], 0
    %11 = vsyncpa [#allocation4], 0
    %s12 = scalar_lea.sflag [#allocation4], 1
    %13 = vsyncpa %s12, 0
    loop: start=0, step=1, limit=4
    $region2: #{tpu_custom_call.1} parent=1 // loop_pre_header
      _
    $region3: #{tpu_custom_call.1} parent=1 // loop_header
      %s15 = sphi 0, %s19
      %p16 = scmp.ge.s32.totalorder %s15, 4
      %s25 = sphi 0, %s27
      %s28 = sphi 0, %s25
      %s29 = sphi 0, %s28
      %s45 = sphi 0, %s29
      %s49 = sphi 0, %s49
      %s51 = sphi 0, %s49
      %s52 = sphi 0, %s51
      %s66 = sphi 0, %s52
      %s72 = sphi 0, %s74
      %s75 = sphi 0, %s72
      %s76 = sphi 0, %s75
      %s92 = sphi 0, %s76
    $region4: #{tpu_custom_call.1} parent=1 // loop_header_branch
      %18 = sbr.rel (%p16) target = $region8
    $region5: #{tpu_custom_call.1} parent=1 // loop_body
      %s20 = ssub.s32 %s15, 1
      %s21 = ssub.s32 %s15, 2
      %s22 = sadd.s32 %s15, 1
      %s23 = ssub.s32 %s15, %s22
      %p24 = scmp.eq.s32.totalorder %s23, 0
      %s26 = sadd.s32 %s25, 1
      %s27 = scalar_select %p24, %s25, %s26
      %p30 = pneg %p24
      %p31 = scmp.eq.s32.totalorder %s15, 1
      %p32 = por %p30, %p31
      %p33 = scmp.ne.s32.totalorder %s25, %s28
      %p34 = scmp.eq.s32.totalorder %s15, 0
      %p35 = por %p33, %p34
      %p36 = scmp.ne.s32.totalorder %s25, %s28
      %p37 = scmp.eq.s32.totalorder %s20, 1
      %p38 = por %p36, %p37
      %p39 = scmp.ne.s32.totalorder %s28, %s29
      %p40 = scmp.eq.s32.totalorder %s20, 0
      %p41 = por %p39, %p40
      %p42 = scmp.ne.s32.totalorder %s28, %s29
      %p43 = scmp.eq.s32.totalorder %s21, 1
      %p44 = por %p42, %p43
      %p46 = scmp.ne.s32.totalorder %s29, %s45
      %p47 = scmp.eq.s32.totalorder %s21, 0
      %p48 = por %p46, %p47
      %s50 = sadd.s32 %s49, 1
      %p53 = scmp.eq.s32.totalorder %s15, 1
      %p54 = scmp.ne.s32.totalorder %s49, %s51
      %p55 = scmp.eq.s32.totalorder %s15, 0
      %p56 = por %p54, %p55
      %p57 = scmp.ne.s32.totalorder %s49, %s51
      %p58 = scmp.eq.s32.totalorder %s20, 1
      %p59 = por %p57, %p58
      %p60 = scmp.ne.s32.totalorder %s51, %s52
      %p61 = scmp.eq.s32.totalorder %s20, 0
      %p62 = por %p60, %p61
      %p63 = scmp.ne.s32.totalorder %s51, %s52
      %p64 = scmp.eq.s32.totalorder %s21, 1
      %p65 = por %p63, %p64
      %p67 = scmp.ne.s32.totalorder %s52, %s66
      %p68 = scmp.eq.s32.totalorder %s21, 0
      %p69 = por %p67, %p68
      %s70 = ssub.s32 %s15, %s22
      %p71 = scmp.eq.s32.totalorder %s70, 0
      %s73 = sadd.s32 %s72, 1
      %s74 = scalar_select %p71, %s72, %s73
      %p77 = pneg %p71
      %p78 = scmp.eq.s32.totalorder %s15, 1
      %p79 = por %p77, %p78
      %p80 = scmp.ne.s32.totalorder %s72, %s75
      %p81 = scmp.eq.s32.totalorder %s15, 0
      %p82 = por %p80, %p81
      %p83 = scmp.ne.s32.totalorder %s72, %s75
      %p84 = scmp.eq.s32.totalorder %s20, 1
      %p85 = por %p83, %p84
      %p86 = scmp.ne.s32.totalorder %s75, %s76
      %p87 = scmp.eq.s32.totalorder %s20, 0
      %p88 = por %p86, %p87
      %p89 = scmp.ne.s32.totalorder %s75, %s76
      %p90 = scmp.eq.s32.totalorder %s21, 1
      %p91 = por %p89, %p90
      %p93 = scmp.ne.s32.totalorder %s76, %s92
      %p94 = scmp.eq.s32.totalorder %s21, 0
      %p95 = por %p93, %p94
      %p96 = scmp.le.s32.totalorder 1, %s15
      %p97 = scmp.lt.s32.totalorder %s15, 3
      %p98 = pnand %p96, %p97
      %p99 = pneg %p98
      // Predicated region
      $region9: #{tpu_custom_call.1} parent=5 // pred_check
        _
      $region10: #{tpu_custom_call.1} parent=5 // pred_check_branch
        %101 = sbr.rel (%p98) target = $region12
      $region11: #{tpu_custom_call.1} parent=5 // pred_region
        %s102 = ssub.s32 %s15, 1
        // Predicated region
        $region13: #{tpu_custom_call.1} parent=11 // pred_check
          %p103 = pneg %p62
        $region14: #{tpu_custom_call.1} parent=11 // pred_check_branch
          %105 = sbr.rel (%p103) target = $region16
        $region15: #{tpu_custom_call.1} parent=11 // pred_region
          %s107 = ssub.s32 128, 128
          %108 = vsyncadd [#allocation6], %s107
          %s110 = sshll.u32 [#allocation5], 4
          %s111 = int_to_ptr.vmem [resolvable:$true] %s110
          %113 = dma.hbm_to_vmem [thread:$0]  %s1, 128, %s111, [#allocation6]
        $region16: #{tpu_custom_call.1} parent=11 // pred_fallthru
          _
      $region12: #{tpu_custom_call.1} parent=5 // pred_fallthru
        _
      %p114 = scmp.lt.s32.totalorder %s15, 2
      // Predicated region
      $region17: #{tpu_custom_call.1} parent=5 // pred_check
        %p115 = pneg %p114
      $region18: #{tpu_custom_call.1} parent=5 // pred_check_branch
        %117 = sbr.rel (%p115) target = $region20
      $region19: #{tpu_custom_call.1} parent=5 // pred_region
        // Predicated region
        $region21: #{tpu_custom_call.1} parent=19 // pred_check
          %p118 = pneg %p35
        $region22: #{tpu_custom_call.1} parent=19 // pred_check_branch
          %120 = sbr.rel (%p118) target = $region24
        $region23: #{tpu_custom_call.1} parent=19 // pred_region
          %s121 = sand.u32 %s25, 1
          %s122 = scalar_lea.sflag [#allocation3], %s121
          %s123 = sand.u32 %s25, 1
          %s124 = smul.addr %s123, 8
          %s125 = scalar_lea.vmem [#allocation2], %s124
          %s127 = ssub.s32 128, 128
          %128 = vsyncadd %s122, %s127
          %s129 = smul.addr %s15, 128
          %s130 = scalar_lea.hbm %s0, %s129
          %s132 = sshll.u32 %s125, 4
          %s133 = int_to_ptr.vmem [resolvable:$true] %s132
          %135 = dma.hbm_to_vmem [thread:$0]  %s130, 128, %s133, %s122
        $region24: #{tpu_custom_call.1} parent=19 // pred_fallthru
          _
      $region20: #{tpu_custom_call.1} parent=5 // pred_fallthru
        _
      %p136 = scmp.le.s32.totalorder 1, %s15
      %p137 = scmp.lt.s32.totalorder %s15, 3
      %p138 = pnand %p136, %p137
      %p139 = pneg %p138
      // Predicated region
      $region25: #{tpu_custom_call.1} parent=5 // pred_check
        _
      $region26: #{tpu_custom_call.1} parent=5 // pred_check_branch
        %141 = sbr.rel (%p138) target = $region28
      $region27: #{tpu_custom_call.1} parent=5 // pred_region
        %s142 = ssub.s32 %s15, 1
        %s143 = sand.u32 %s28, 1
        %s144 = scalar_lea.sflag [#allocation3], %s143
        %s145 = sand.u32 %s28, 1
        %s146 = smul.addr %s145, 8
        %s147 = scalar_lea.vmem [#allocation2], %s146
        // Predicated region
        $region29: #{tpu_custom_call.1} parent=27 // pred_check
          %p148 = pneg %p41
        $region30: #{tpu_custom_call.1} parent=27 // pred_check_branch
          %150 = sbr.rel (%p148) target = $region32
        $region31: #{tpu_custom_call.1} parent=27 // pred_region
          %151 = dma.done %s144, 128
        $region32: #{tpu_custom_call.1} parent=27 // pred_fallthru
          _
        // Predicated region
        $region33: #{tpu_custom_call.1} parent=27 // pred_check
          %p152 = pneg %p62
        $region34: #{tpu_custom_call.1} parent=27 // pred_check_branch
          %154 = sbr.rel (%p152) target = $region36
        $region35: #{tpu_custom_call.1} parent=27 // pred_region
          %155 = dma.done [#allocation6], 128
        $region36: #{tpu_custom_call.1} parent=27 // pred_fallthru
          _
        %s156 = sand.u32 %s28, 1
        %s157 = scalar_lea.sflag [#allocation3], %s156
        %s158 = sand.u32 %s28, 1
        %s159 = smul.addr %s158, 8
        %s160 = scalar_lea.vmem [#allocation2], %s159
        %p161 = pneg %p41
        %p162 = pneg %p38
        %p163 = pneg %p62
        %p164 = pneg %p59
        %p165 = pneg %p88
        %p166 = pneg %p85
        %s167 = sand.u32 %s75, 1
        %s168 = scalar_lea.sflag [#allocation4], %s167
        %s169 = sand.u32 %s75, 1
        %s170 = smul.addr %s169, 8
        %s171 = scalar_lea.vmem [#allocation7], %s170
        %v172 = vld [vmem:[%s147] sm:$0xff]
        %v173 = vld [vmem:[#allocation5] sm:$0xff]
        %v174 = vadd.f32 %v172, %v173
        %vm175 = vcmask 261120
        %176 = vst.msk [vmem:[%s171] sm:$0xff] %vm175, %v174
        %s177 = sand.u32 %s75, 1
        %s178 = scalar_lea.sflag [#allocation4], %s177
        %s179 = sand.u32 %s75, 1
        %s180 = smul.addr %s179, 8
        %s181 = scalar_lea.vmem [#allocation7], %s180
        // Predicated region
        $region37: #{tpu_custom_call.1} parent=27 // pred_check
          %p182 = pneg %p85
        $region38: #{tpu_custom_call.1} parent=27 // pred_check_branch
          %184 = sbr.rel (%p182) target = $region40
        $region39: #{tpu_custom_call.1} parent=27 // pred_region
          %s186 = ssub.s32 128, 128
          %187 = vsyncadd %s178, %s186
          %s188 = smul.addr %s20, 128
          %s189 = scalar_lea.hbm %s2, %s188
          %s191 = sshll.u32 %s181, 4
          %s192 = int_to_ptr.vmem [resolvable:$true] %s191
          %194 = dma.vmem_to_hbm [thread:$0]  %s192, 128, %s189, %s178
        $region40: #{tpu_custom_call.1} parent=27 // pred_fallthru
          _
      $region28: #{tpu_custom_call.1} parent=5 // pred_fallthru
        _
      %p195 = scmp.le.s32.totalorder 2, %s15
      // Predicated region
      $region41: #{tpu_custom_call.1} parent=5 // pred_check
        %p196 = pneg %p195
      $region42: #{tpu_custom_call.1} parent=5 // pred_check_branch
        %198 = sbr.rel (%p196) target = $region44
      $region43: #{tpu_custom_call.1} parent=5 // pred_region
        %s199 = ssub.s32 %s15, 2
        // Predicated region
        $region45: #{tpu_custom_call.1} parent=43 // pred_check
          %p200 = pneg %p91
        $region46: #{tpu_custom_call.1} parent=43 // pred_check_branch
          %202 = sbr.rel (%p200) target = $region48
        $region47: #{tpu_custom_call.1} parent=43 // pred_region
          %s203 = sand.u32 %s76, 1
          %s204 = scalar_lea.sflag [#allocation4], %s203
          %s205 = sand.u32 %s76, 1
          %s206 = smul.addr %s205, 8
          %s207 = scalar_lea.vmem [#allocation7], %s206
          %208 = dma.done %s204, 128
        $region48: #{tpu_custom_call.1} parent=43 // pred_fallthru
          _
      $region44: #{tpu_custom_call.1} parent=5 // pred_fallthru
        _
    $region6: #{tpu_custom_call.1} parent=1 // loop_footer
      %s19 = sadd.s32 1, %s15
    $region7: #{tpu_custom_call.1} parent=1 // loop_footer_branch
      %14 = sbr.rel target = $region3
    $region8: #{tpu_custom_call.1} parent=1 // loop_exit
      _
    %209 = vsyncpa [#allocation3], 1
    %s210 = scalar_lea.sflag [#allocation3], 1
    %211 = vsyncpa %s210, 1
    %212 = vsyncpa [#allocation6], 1
    %213 = vsyncpa [#allocation4], 1
    %s214 = scalar_lea.sflag [#allocation4], 1
    %215 = vsyncpa %s214, 1

</llo_original>
